<compile_context>
chip_gen: v7x
topology: tpu7x:2x2x1
jax: 0.10.0
libtpu: 0.0.40
codegen_flags: <defaults>
</compile_context>

<pallas_src>
import math

import jax
import jax.numpy as jnp
from jax.experimental import pallas as pl
from jax.experimental.pallas import tpu as pltpu


# Target packed rows (each packed row = P batch rows) per grid step.  At
# P*F = 128 lanes / f32, a 2048-row tile is 1 MiB, so double-buffered in+out
# tiles are ~4 MiB -- big enough to amortize the ~0.35 us/step grid overhead
# while staying far under VMEM on v5e/v6e (128 MiB) and v7x (64 MiB).
_TBP_TARGET = 2048
_SUBLANE_ALIGN = 16   # multiple of 8 (f32 tiles) and 16 (bf16 tiles)


def _round_up(x, m):
    return ((x + m - 1) // m) * m


def _ae_kernel(x_ref,
               w1_ref, b1_ref,
               w2_ref, b2_ref,
               w3_ref, b3_ref,
               w4_ref, b4_ref,
               o_ref):
    """One batch tile of the 4-layer MLP autoencoder, fully fused in VMEM.

    Activations carry P batch rows per 128-lane row (block-diagonal weights),
    so loads, stores, bias adds and ReLUs on the F-wide layers are lane-dense.
    MXU accumulation is always f32; streamed inputs may be f32 or bf16.
    """
    cdt = w1_ref.dtype
    x = x_ref[...]

    # Layer 1: Linear + ReLU
    h = jnp.dot(x, w1_ref[...], preferred_element_type=jnp.float32) + b1_ref[...]
    h = jnp.maximum(h, 0.0).astype(cdt)

    # Layer 2: Linear (no activation -- matches the PyTorch Sequential)
    h = jnp.dot(h, w2_ref[...], preferred_element_type=jnp.float32) + b2_ref[...]
    h = h.astype(cdt)

    # Layer 3: Linear + ReLU
    h = jnp.dot(h, w3_ref[...], preferred_element_type=jnp.float32) + b3_ref[...]
    h = jnp.maximum(h, 0.0).astype(cdt)

    # Layer 4: Linear
    out = jnp.dot(h, w4_ref[...], preferred_element_type=jnp.float32) + b4_ref[...]
    o_ref[...] = out.astype(o_ref.dtype)


def _const_spec(a):
    """Full-array block with a constant index map (resident across the grid)."""
    return pl.BlockSpec(a.shape, lambda i: (0, 0))


def _pack_params(params, pack, cdt):
    """Block-diagonal packed weights kron(I_P, W) and P-tiled biases."""
    packed = []
    for k in range(1, 5):
        w = params[f"w{k}"].astype(cdt)
        b = params[f"b{k}"].astype(jnp.float32)     # bias add happens in f32
        if pack > 1:
            w = jnp.kron(jnp.eye(pack, dtype=w.dtype), w)
            b = jnp.tile(b, (1, pack))
        packed += [w, b]
    return packed


def autoencoder_forward(x, params, *, tile_rows=None, compute_dtype=None):
    """x: (B, F).  params: dict of weights (in, out) and biases (1, out).

    compute_dtype: optional streaming/matmul dtype (e.g. jnp.bfloat16) for the
    HBM-bound path; MXU accumulation stays f32.  Output is in compute dtype.
    """
    B, F = x.shape
    cdt = jnp.dtype(compute_dtype) if compute_dtype is not None else x.dtype
    h2 = params["w1"].shape[1]
    h4 = params["w2"].shape[1]

    # Packing factor: P consecutive batch rows share one (P*F)-lane row.
    pack = max(1, 128 // F) if F <= 128 else 1
    lanes = pack * F

    x_c = x.astype(cdt)
    Bp = _round_up(B, pack)
    if Bp != B:
        # Tiny pad (< pack rows) only to make the packing reshape legal.
        x_c = jnp.pad(x_c, ((0, Bp - B), (0, 0)))
    rows = Bp // pack
    # Zero-copy (bitcast) reshape for row-major inputs: (Bp, F) -> (rows, P*F).
    x_p = x_c.reshape(rows, lanes)

    # --- Tile selection ------------------------------------------------------
    if tile_rows is None:
        target = _TBP_TARGET
    else:
        target = max(1, tile_rows // pack)
    if rows <= _SUBLANE_ALIGN:
        tbp = rows                               # single full-extent block
    else:
        # Cap at ~half the rows so the grid has >= 2 steps: v7x has 2 TCs and
        # "parallel" only helps when there is more than one step to shard.
        tbp = min(target, _round_up(pl.cdiv(rows, 2), _SUBLANE_ALIGN))
        tbp = max(_SUBLANE_ALIGN, _round_up(tbp, _SUBLANE_ALIGN))
    grid = (pl.cdiv(rows, tbp),)                 # ragged last block is masked

    packed_params = _pack_params(params, pack, cdt)

    # --- VMEM budget (working set + headroom, under every generation's cap) --
    itemsize = jnp.dtype(cdt).itemsize
    weight_bytes = sum(a.size * a.dtype.itemsize for a in packed_params)
    io_bytes = 2 * (2 * tbp * lanes * itemsize)          # double-buffered in/out
    act_bytes = 4 * tbp * pack * (h2 + h4 + h2 + F)      # fused f32 intermediates
    vmem_limit = int(1.5 * (weight_bytes + io_bytes + act_bytes)) + (8 << 20)
    vmem_limit = min(vmem_limit, 32 << 20)

    batch_spec = pl.BlockSpec((tbp, lanes), lambda i: (i, 0))

    out_p = pl.pallas_call(
        _ae_kernel,
        out_shape=jax.ShapeDtypeStruct((rows, lanes), cdt),
        grid=grid,
        in_specs=[batch_spec] + [_const_spec(a) for a in packed_params],
        out_specs=batch_spec,
        compiler_params=pltpu.CompilerParams(
            dimension_semantics=("parallel",),
            vmem_limit_bytes=vmem_limit),
    )(x_p, *packed_params)

    out = out_p.reshape(Bp, F)
    if Bp != B:
        out = out[:B]
    return out


def init_params(key, feature_size):
    """Deterministic init matching the PyTorch layer shapes.

    PyTorch nn.Linear(in, out) has weight (out, in); we store the transpose
    (in, out) so the kernel does x @ W + b.
    """
    h2 = int(math.ceil(feature_size / 2))
    h4 = int(math.ceil(feature_size / 4))
    dims = [(feature_size, h2), (h2, h4), (h4, h2), (h2, feature_size)]

    params = {}
    for i, (fan_in, fan_out) in enumerate(dims, start=1):
        key, kw, kb = jax.random.split(key, 3)
        bound = 1.0 / math.sqrt(fan_in)   # PyTorch default Linear init range
        params[f"w{i}"] = jax.random.uniform(
            kw, (fan_in, fan_out), jnp.float32, -bound, bound)
        params[f"b{i}"] = jax.random.uniform(
            kb, (1, fan_out), jnp.float32, -bound, bound)
    return params


def reference_forward(x, params):
    """Pure-JAX reference (matches PyTorch semantics)."""
    h = jnp.maximum(x @ params["w1"] + params["b1"], 0.0)
    h = h @ params["w2"] + params["b2"]
    h = jnp.maximum(h @ params["w3"] + params["b3"], 0.0)
    return h @ params["w4"] + params["b4"]


if __name__ == "__main__":
    key = jax.random.PRNGKey(0)
    feature_size = 32
    key, kp = jax.random.split(key)
    params = init_params(kp, feature_size)

    # --- Small, spec-sized check (B=8): single packed block of 2 rows. ------
    key, kx = jax.random.split(key)
    x_small = jax.random.normal(kx, (8, feature_size), jnp.float32)
    out_small = jax.block_until_ready(autoencoder_forward(x_small, params))
    ref_small = reference_forward(x_small, params)
    assert out_small.shape == x_small.shape
    assert jnp.allclose(out_small, ref_small, atol=1e-5, rtol=1e-5), \
        "small-batch mismatch vs reference"

    # --- Multi-tile + ragged final block (B=1000 -> 250 packed rows, tile 128;
    #     validates Pallas OOB-write masking instead of a full-batch pad). ----
    key, kx2 = jax.random.split(key)
    x_big = jax.random.normal(kx2, (1000, feature_size), jnp.float32)
    out_big = jax.block_until_ready(autoencoder_forward(x_big, params))
    ref_big = reference_forward(x_big, params)
    assert out_big.shape == x_big.shape
    assert jnp.allclose(out_big, ref_big, atol=1e-5, rtol=1e-5), \
        "multi-tile / ragged-block mismatch vs reference"

    # --- Batch not a multiple of the packing factor (tiny pad path). --------
    key, kx3 = jax.random.split(key)
    x_odd = jax.random.normal(kx3, (30, feature_size), jnp.float32)
    out_odd = jax.block_until_ready(autoencoder_forward(x_odd, params))
    ref_odd = reference_forward(x_odd, params)
    assert out_odd.shape == x_odd.shape
    assert jnp.allclose(out_odd, ref_odd, atol=1e-5, rtol=1e-5), \
        "odd-batch mismatch vs reference"

    # --- Optional bf16 streaming path (v5e/v6e/v7x HBM-roofline option). ----
    key, kx4 = jax.random.split(key)
    x_bf = jax.random.normal(kx4, (256, feature_size), jnp.float32)
    out_bf = jax.block_until_ready(
        autoencoder_forward(x_bf, params, compute_dtype=jnp.bfloat16))
    ref_bf = reference_forward(x_bf, params)
    assert out_bf.shape == x_bf.shape
    assert jnp.allclose(out_bf.astype(jnp.float32), ref_bf,
                        atol=1e-1, rtol=1e-1), "bf16-path mismatch vs reference"

    print("KERNEL_OK")
</pallas_src>

<mosaic_0001>
module attributes {stable_mosaic.version = 11 : i64} {
  func.func @_ae_kernel(%arg0: i32, %arg1: memref<2x128xf32, #tpu.memory_space<vmem>>, %arg2: memref<128x64xf32, #tpu.memory_space<vmem>>, %arg3: memref<1x64xf32, #tpu.memory_space<vmem>>, %arg4: memref<64x32xf32, #tpu.memory_space<vmem>>, %arg5: memref<1x32xf32, #tpu.memory_space<vmem>>, %arg6: memref<32x64xf32, #tpu.memory_space<vmem>>, %arg7: memref<1x64xf32, #tpu.memory_space<vmem>>, %arg8: memref<64x128xf32, #tpu.memory_space<vmem>>, %arg9: memref<1x128xf32, #tpu.memory_space<vmem>>, %arg10: memref<2x128xf32, #tpu.memory_space<vmem>>) attributes {dimension_semantics = [#tpu.dimension_semantics<parallel>], iteration_bounds = array<i64: 1>, scalar_prefetch = 0 : i64, scratch_operands = 0 : i64, tpu.core_type = #tpu.core_type<tc>, window_params = [{transform_indices = @transform_0, window_bounds = array<i64: 2, 128>}, {pipeline_mode = #tpu.pipeline_mode<synchronous>, transform_indices = @transform_1, window_bounds = array<i64: 128, 64>}, {pipeline_mode = #tpu.pipeline_mode<synchronous>, transform_indices = @transform_2, window_bounds = array<i64: 1, 64>}, {pipeline_mode = #tpu.pipeline_mode<synchronous>, transform_indices = @transform_3, window_bounds = array<i64: 64, 32>}, {pipeline_mode = #tpu.pipeline_mode<synchronous>, transform_indices = @transform_4, window_bounds = array<i64: 1, 32>}, {pipeline_mode = #tpu.pipeline_mode<synchronous>, transform_indices = @transform_5, window_bounds = array<i64: 32, 64>}, {pipeline_mode = #tpu.pipeline_mode<synchronous>, transform_indices = @transform_6, window_bounds = array<i64: 1, 64>}, {pipeline_mode = #tpu.pipeline_mode<synchronous>, transform_indices = @transform_7, window_bounds = array<i64: 64, 128>}, {pipeline_mode = #tpu.pipeline_mode<synchronous>, transform_indices = @transform_8, window_bounds = array<i64: 1, 128>}, {transform_indices = @transform_9, window_bounds = array<i64: 2, 128>}]} {
    %c0 = arith.constant 0 : index
    %c0_0 = arith.constant 0 : index
    %0 = vector.load %arg1[%c0, %c0_0] : memref<2x128xf32, #tpu.memory_space<vmem>>, vector<2x128xf32>
    %c0_1 = arith.constant 0 : index
    %c0_2 = arith.constant 0 : index
    %1 = vector.load %arg2[%c0_1, %c0_2] : memref<128x64xf32, #tpu.memory_space<vmem>>, vector<128x64xf32>
    %cst = arith.constant dense<0.000000e+00> : vector<2x64xf32>
    %2 = tpu.matmul %0, %1, %cst {dimension_numbers = #tpu.dot_dimension_numbers<[1], [0], [0], [1], [0, 0, 1, 1], [], []>} : vector<2x128xf32>, vector<128x64xf32>, vector<2x64xf32> -> vector<2x64xf32>
    %c0_3 = arith.constant 0 : index
    %c0_4 = arith.constant 0 : index
    %3 = vector.load %arg3[%c0_3, %c0_4] : memref<1x64xf32, #tpu.memory_space<vmem>>, vector<1x64xf32>
    %4 = vector.broadcast %3 : vector<1x64xf32> to vector<2x64xf32>
    %5 = arith.addf %2, %4 : vector<2x64xf32>
    %cst_5 = arith.constant 0.000000e+00 : f32
    %6 = vector.broadcast %cst_5 : f32 to vector<2x64xf32>
    %7 = arith.maximumf %5, %6 : vector<2x64xf32>
    %c0_6 = arith.constant 0 : index
    %c0_7 = arith.constant 0 : index
    %8 = vector.load %arg4[%c0_6, %c0_7] : memref<64x32xf32, #tpu.memory_space<vmem>>, vector<64x32xf32>
    %cst_8 = arith.constant dense<0.000000e+00> : vector<2x32xf32>
    %9 = tpu.matmul %7, %8, %cst_8 {dimension_numbers = #tpu.dot_dimension_numbers<[1], [0], [0], [1], [0, 0, 1, 1], [], []>} : vector<2x64xf32>, vector<64x32xf32>, vector<2x32xf32> -> vector<2x32xf32>
    %c0_9 = arith.constant 0 : index
    %c0_10 = arith.constant 0 : index
    %10 = vector.load %arg5[%c0_9, %c0_10] : memref<1x32xf32, #tpu.memory_space<vmem>>, vector<1x32xf32>
    %11 = vector.broadcast %10 : vector<1x32xf32> to vector<2x32xf32>
    %12 = arith.addf %9, %11 : vector<2x32xf32>
    %c0_11 = arith.constant 0 : index
    %c0_12 = arith.constant 0 : index
    %13 = vector.load %arg6[%c0_11, %c0_12] : memref<32x64xf32, #tpu.memory_space<vmem>>, vector<32x64xf32>
    %cst_13 = arith.constant dense<0.000000e+00> : vector<2x64xf32>
    %14 = tpu.matmul %12, %13, %cst_13 {dimension_numbers = #tpu.dot_dimension_numbers<[1], [0], [0], [1], [0, 0, 1, 1], [], []>} : vector<2x32xf32>, vector<32x64xf32>, vector<2x64xf32> -> vector<2x64xf32>
    %c0_14 = arith.constant 0 : index
    %c0_15 = arith.constant 0 : index
    %15 = vector.load %arg7[%c0_14, %c0_15] : memref<1x64xf32, #tpu.memory_space<vmem>>, vector<1x64xf32>
    %16 = vector.broadcast %15 : vector<1x64xf32> to vector<2x64xf32>
    %17 = arith.addf %14, %16 : vector<2x64xf32>
    %cst_16 = arith.constant 0.000000e+00 : f32
    %18 = vector.broadcast %cst_16 : f32 to vector<2x64xf32>
    %19 = arith.maximumf %17, %18 : vector<2x64xf32>
    %c0_17 = arith.constant 0 : index
    %c0_18 = arith.constant 0 : index
    %20 = vector.load %arg8[%c0_17, %c0_18] : memref<64x128xf32, #tpu.memory_space<vmem>>, vector<64x128xf32>
    %cst_19 = arith.constant dense<0.000000e+00> : vector<2x128xf32>
    %21 = tpu.matmul %19, %20, %cst_19 {dimension_numbers = #tpu.dot_dimension_numbers<[1], [0], [0], [1], [0, 0, 1, 1], [], []>} : vector<2x64xf32>, vector<64x128xf32>, vector<2x128xf32> -> vector<2x128xf32>
    %c0_20 = arith.constant 0 : index
    %c0_21 = arith.constant 0 : index
    %22 = vector.load %arg9[%c0_20, %c0_21] : memref<1x128xf32, #tpu.memory_space<vmem>>, vector<1x128xf32>
    %23 = vector.broadcast %22 : vector<1x128xf32> to vector<2x128xf32>
    %24 = arith.addf %21, %23 : vector<2x128xf32>
    %c0_22 = arith.constant 0 : index
    %c0_23 = arith.constant 0 : index
    %25 = vector.load %arg10[%c0_22, %c0_23] : memref<2x128xf32, #tpu.memory_space<vmem>>, vector<2x128xf32>
    tpu.vector_store %arg10[%c0_22, %c0_23], %24 {strides = array<i32>} : memref<2x128xf32, #tpu.memory_space<vmem>>, vector<2x128xf32>,
    return
  }
  func.func @transform_0(%arg0: i32) -> (i32, i32) {
    %c0_i32 = arith.constant 0 : i32
    %c0_i32_0 = arith.constant 0 : i32
    return %arg0, %c0_i32 : i32, i32
  }
  func.func @transform_1(%arg0: i32) -> (i32, i32) {
    %c0_i32 = arith.constant 0 : i32
    %c0_i32_0 = arith.constant 0 : i32
    %c0_i32_1 = arith.constant 0 : i32
    return %c0_i32, %c0_i32_0 : i32, i32
  }
  func.func @transform_2(%arg0: i32) -> (i32, i32) {
    %c0_i32 = arith.constant 0 : i32
    %c0_i32_0 = arith.constant 0 : i32
    %c0_i32_1 = arith.constant 0 : i32
    return %c0_i32, %c0_i32_0 : i32, i32
  }
  func.func @transform_3(%arg0: i32) -> (i32, i32) {
    %c0_i32 = arith.constant 0 : i32
    %c0_i32_0 = arith.constant 0 : i32
    %c0_i32_1 = arith.constant 0 : i32
    return %c0_i32, %c0_i32_0 : i32, i32
  }
  func.func @transform_4(%arg0: i32) -> (i32, i32) {
    %c0_i32 = arith.constant 0 : i32
    %c0_i32_0 = arith.constant 0 : i32
    %c0_i32_1 = arith.constant 0 : i32
    return %c0_i32, %c0_i32_0 : i32, i32
  }
  func.func @transform_5(%arg0: i32) -> (i32, i32) {
    %c0_i32 = arith.constant 0 : i32
    %c0_i32_0 = arith.constant 0 : i32
    %c0_i32_1 = arith.constant 0 : i32
    return %c0_i32, %c0_i32_0 : i32, i32
  }
  func.func @transform_6(%arg0: i32) -> (i32, i32) {
    %c0_i32 = arith.constant 0 : i32
    %c0_i32_0 = arith.constant 0 : i32
    %c0_i32_1 = arith.constant 0 : i32
    return %c0_i32, %c0_i32_0 : i32, i32
  }
  func.func @transform_7(%arg0: i32) -> (i32, i32) {
    %c0_i32 = arith.constant 0 : i32
    %c0_i32_0 = arith.constant 0 : i32
    %c0_i32_1 = arith.constant 0 : i32
    return %c0_i32, %c0_i32_0 : i32, i32
  }
  func.func @transform_8(%arg0: i32) -> (i32, i32) {
    %c0_i32 = arith.constant 0 : i32
    %c0_i32_0 = arith.constant 0 : i32
    %c0_i32_1 = arith.constant 0 : i32
    return %c0_i32, %c0_i32_0 : i32, i32
  }
  func.func @transform_9(%arg0: i32) -> (i32, i32) {
    %c0_i32 = arith.constant 0 : i32
    %c0_i32_0 = arith.constant 0 : i32
    return %arg0, %c0_i32 : i32, i32
  }
}

</mosaic_0001>

<llo_original>
// kernel: tpu_custom_call.1
$region0: #{tpu_custom_call.1}
  #allocation0 [shape = 'u32[]', space=smem, size = 0x4, offset = 0x4, fixed_abs, tag = 'smem constant byte address 0x4 - core index']
  #allocation1 [shape = 'u32[144,128]{1,0:T(1,128)}', space=vmem, size = 0x12000, scoped, tag = 'internal scratch']
  %s0 = inlined_call_operand.vmem [shape: f32[2,128], index: 0, kind: input, shape index: {}]
  %s1 = inlined_call_operand.vmem [shape: f32[128,64], index: 1, kind: input, shape index: {}]
  %s2 = inlined_call_operand.vmem [shape: f32[1,64], index: 2, kind: input, shape index: {}]
  %s3 = inlined_call_operand.vmem [shape: f32[64,32], index: 3, kind: input, shape index: {}]
  %s4 = inlined_call_operand.vmem [shape: f32[1,32], index: 4, kind: input, shape index: {}]
  %s5 = inlined_call_operand.vmem [shape: f32[32,64], index: 5, kind: input, shape index: {}]
  %s6 = inlined_call_operand.vmem [shape: f32[1,64], index: 6, kind: input, shape index: {}]
  %s7 = inlined_call_operand.vmem [shape: f32[64,128], index: 7, kind: input, shape index: {}]
  %s8 = inlined_call_operand.vmem [shape: f32[1,128], index: 8, kind: input, shape index: {}]
  %s9 = inlined_call_operand.hbm [shape: f32[2,128], index: 9, kind: output, shape index: {}]
  %s10 = sld [smem:[#allocation0]]
  $region46: #{tpu_custom_call.1} parent=0
    _
  %s12 = ssub.s32 1, %s10
  %s13 = scalar_select 0, %s12, %s10
  $region1: #{tpu_custom_call.1} parent=0
    #allocation2 [shape = 'u8[1024]{0}', space=vmem, size = 0x400, scoped, tag = 'output window, operand 0, single buffered']
    #allocation3 [shape = 's32[1]{0}', space=sflag, size = 0x4, scoped, tag = 'scoped memory for tpu_custom_call.1']
    %14 = vsyncpa [#allocation3], 0
    // Predicated region
    $region2: #{tpu_custom_call.1} parent=1 // pred_check
      _
    $region3: #{tpu_custom_call.1} parent=1 // pred_check_branch
      %16 = sbr.rel (0) target = $region5
    $region4: #{tpu_custom_call.1} parent=1 // pred_region
      _
    $region5: #{tpu_custom_call.1} parent=1 // pred_fallthru
      _
    // Predicated region
    $region6: #{tpu_custom_call.1} parent=1 // pred_check
      _
    $region7: #{tpu_custom_call.1} parent=1 // pred_check_branch
      %18 = sbr.rel (0) target = $region9
    $region8: #{tpu_custom_call.1} parent=1 // pred_region
      _
    $region9: #{tpu_custom_call.1} parent=1 // pred_fallthru
      _
    // Predicated region
    $region10: #{tpu_custom_call.1} parent=1 // pred_check
      _
    $region11: #{tpu_custom_call.1} parent=1 // pred_check_branch
      %20 = sbr.rel (0) target = $region13
    $region12: #{tpu_custom_call.1} parent=1 // pred_region
      _
    $region13: #{tpu_custom_call.1} parent=1 // pred_fallthru
      _
    // Predicated region
    $region14: #{tpu_custom_call.1} parent=1 // pred_check
      _
    $region15: #{tpu_custom_call.1} parent=1 // pred_check_branch
      %22 = sbr.rel (0) target = $region17
    $region16: #{tpu_custom_call.1} parent=1 // pred_region
      _
    $region17: #{tpu_custom_call.1} parent=1 // pred_fallthru
      _
    // Predicated region
    $region18: #{tpu_custom_call.1} parent=1 // pred_check
      _
    $region19: #{tpu_custom_call.1} parent=1 // pred_check_branch
      %24 = sbr.rel (0) target = $region21
    $region20: #{tpu_custom_call.1} parent=1 // pred_region
      _
    $region21: #{tpu_custom_call.1} parent=1 // pred_fallthru
      _
    // Predicated region
    $region22: #{tpu_custom_call.1} parent=1 // pred_check
      _
    $region23: #{tpu_custom_call.1} parent=1 // pred_check_branch
      %26 = sbr.rel (0) target = $region25
    $region24: #{tpu_custom_call.1} parent=1 // pred_region
      _
    $region25: #{tpu_custom_call.1} parent=1 // pred_fallthru
      _
    // Predicated region
    $region26: #{tpu_custom_call.1} parent=1 // pred_check
      _
    $region27: #{tpu_custom_call.1} parent=1 // pred_check_branch
      %28 = sbr.rel (0) target = $region29
    $region28: #{tpu_custom_call.1} parent=1 // pred_region
      _
    $region29: #{tpu_custom_call.1} parent=1 // pred_fallthru
      _
    // Predicated region
    $region30: #{tpu_custom_call.1} parent=1 // pred_check
      _
    $region31: #{tpu_custom_call.1} parent=1 // pred_check_branch
      %30 = sbr.rel (0) target = $region33
    $region32: #{tpu_custom_call.1} parent=1 // pred_region
      _
    $region33: #{tpu_custom_call.1} parent=1 // pred_fallthru
      _
    // Predicated region
    $region34: #{tpu_custom_call.1} parent=1 // pred_check
      _
    $region35: #{tpu_custom_call.1} parent=1 // pred_check_branch
      %32 = sbr.rel (0) target = $region37
    $region36: #{tpu_custom_call.1} parent=1 // pred_region
      _
    $region37: #{tpu_custom_call.1} parent=1 // pred_fallthru
      _
    %v33 = vld [vmem:[%s0] sm:$0x3]
    %v34 = vld [vmem:[%s1] sm:$0xff]
    %v35 = vld [vmem:[%s1 + $0x8] sm:$0xff]
    %v36 = vld [vmem:[%s1 + $0x10] sm:$0xff]
    %v37 = vld [vmem:[%s1 + $0x18] sm:$0xff]
    %v38 = vld [vmem:[%s1 + $0x20] sm:$0xff]
    %v39 = vld [vmem:[%s1 + $0x28] sm:$0xff]
    %v40 = vld [vmem:[%s1 + $0x30] sm:$0xff]
    %v41 = vld [vmem:[%s1 + $0x38] sm:$0xff]
    %v42 = vld [vmem:[%s1 + $0x40] sm:$0xff]
    %v43 = vld [vmem:[%s1 + $0x48] sm:$0xff]
    %v44 = vld [vmem:[%s1 + $0x50] sm:$0xff]
    %v45 = vld [vmem:[%s1 + $0x58] sm:$0xff]
    %v46 = vld [vmem:[%s1 + $0x60] sm:$0xff]
    %v47 = vld [vmem:[%s1 + $0x68] sm:$0xff]
    %v48 = vld [vmem:[%s1 + $0x70] sm:$0xff]
    %v49 = vld [vmem:[%s1 + $0x78] sm:$0xff]
    %v50 = vld [vmem:[%s2] sm:$0x1]
    %v52 = vlaneseq
    %v53 = vshrl.u32 %v52, 7
    %v54 = vsub.s32 0, %v53
    %v55 = vrot.slane %v50, %v54
    %57 = vmatprep.subr.mxu0 0.0
    %58 = vmatpush1.msra.mxu0 %v34
    %59 = vmatprep.subr.mxu0 0.0
    %60 = vmatpush1.msra.mxu0 %v35
    %61 = vmatprep.subr.mxu0 0.0
    %62 = vmatpush1.msra.mxu0 %v36
    %63 = vmatprep.subr.mxu0 0.0
    %64 = vmatpush1.msra.mxu0 %v37
    %65 = vmatprep.subr.mxu0 0.0
    %66 = vmatpush1.msra.mxu0 %v38
    %67 = vmatprep.subr.mxu0 0.0
    %68 = vmatpush1.msra.mxu0 %v39
    %69 = vmatprep.subr.mxu0 0.0
    %70 = vmatpush1.msra.mxu0 %v40
    %71 = vmatprep.subr.mxu0 0.0
    %72 = vmatpush1.msra.mxu0 %v41
    %73 = vmatprep.subr.mxu0 0.0
    %74 = vmatpush1.msra.mxu0 %v42
    %75 = vmatprep.subr.mxu0 0.0
    %76 = vmatpush1.msra.mxu0 %v43
    %77 = vmatprep.subr.mxu0 0.0
    %78 = vmatpush1.msra.mxu0 %v44
    %79 = vmatprep.subr.mxu0 0.0
    %80 = vmatpush1.msra.mxu0 %v45
    %81 = vmatprep.subr.mxu0 0.0
    %82 = vmatpush1.msra.mxu0 %v46
    %83 = vmatprep.subr.mxu0 0.0
    %84 = vmatpush1.msra.mxu0 %v47
    %85 = vmatprep.subr.mxu0 0.0
    %86 = vmatpush1.msra.mxu0 %v48
    %87 = vmatprep.subr.mxu0 0.0
    %88 = vmatpush1.msra.mxu0 %v49
    %89 = vmatprep.subr.mxu0 0.0
    %90 = vmatpush1.msra.mxu0 0.0
    %91 = vmatprep.subr.mxu0 0.0
    %92 = vmatpush1.msra.mxu0 0.0
    %93 = vmatprep.subr.mxu0 0.0
    %94 = vmatpush1.msra.mxu0 0.0
    %95 = vmatprep.subr.mxu0 0.0
    %96 = vmatpush1.msra.mxu0 0.0
    %97 = vmatprep.subr.mxu0 0.0
    %98 = vmatpush1.msra.mxu0 0.0
    %99 = vmatprep.subr.mxu0 0.0
    %100 = vmatpush1.msra.mxu0 0.0
    %101 = vmatprep.subr.mxu0 0.0
    %102 = vmatpush1.msra.mxu0 0.0
    %103 = vmatprep.subr.mxu0 0.0
    %104 = vmatpush1.msra.mxu0 0.0
    %105 = vmatprep.subr.mxu0 0.0
    %106 = vmatpush1.msra.mxu0 0.0
    %107 = vmatprep.subr.mxu0 0.0
    %108 = vmatpush1.msra.mxu0 0.0
    %109 = vmatprep.subr.mxu0 0.0
    %110 = vmatpush1.msra.mxu0 0.0
    %111 = vmatprep.subr.mxu0 0.0
    %112 = vmatpush1.msra.mxu0 0.0
    %113 = vmatprep.subr.mxu0 0.0
    %114 = vmatpush1.msra.mxu0 0.0
    %115 = vmatprep.subr.mxu0 0.0
    %116 = vmatpush1.msra.mxu0 0.0
    %117 = vmatprep.subr.mxu0 0.0
    %118 = vmatpush1.msra.mxu0 0.0
    %119 = vmatprep.subr.mxu0 0.0
    %120 = vmatpush1.msra.mxu0 0.0
    %121 = vmatprep.mubr.f32.mxu0 0.0
    %122 = vmatmul.mubr.f32.gmra.mrb[0].mxu0 %v33
    %v123 = vpop.f32.mrb[0].mxu0
    %v124 = vadd.f32 %v55, %v123
    %v125 = vpop.f32.mrb[0].mxu0
    %126 = vdwg.mxu0
    %v127 = vmax.f32 %v124, 0.0
    %v128 = vld [vmem:[%s3] sm:$0xff]
    %v129 = vld [vmem:[%s3 + $0x8] sm:$0xff]
    %v130 = vld [vmem:[%s3 + $0x10] sm:$0xff]
    %v131 = vld [vmem:[%s3 + $0x18] sm:$0xff]
    %v132 = vld [vmem:[%s3 + $0x20] sm:$0xff]
    %v133 = vld [vmem:[%s3 + $0x28] sm:$0xff]
    %v134 = vld [vmem:[%s3 + $0x30] sm:$0xff]
    %v135 = vld [vmem:[%s3 + $0x38] sm:$0xff]
    %v136 = vld [vmem:[%s4] sm:$0x1]
    %v138 = vlaneseq
    %v139 = vshrl.u32 %v138, 7
    %v140 = vsub.s32 0, %v139
    %v141 = vrot.slane %v136, %v140
    %vm143 = vcmask 523264
    %v145 = vsel %vm143, %v127, 0
    %147 = vmatprep.subr.mxu0 0.0
    %148 = vmatpush1.msra.mxu0 %v128
    %149 = vmatprep.subr.mxu0 0.0
    %150 = vmatpush1.msra.mxu0 %v129
    %151 = vmatprep.subr.mxu0 0.0
    %152 = vmatpush1.msra.mxu0 %v130
    %153 = vmatprep.subr.mxu0 0.0
    %154 = vmatpush1.msra.mxu0 %v131
    %155 = vmatprep.subr.mxu0 0.0
    %156 = vmatpush1.msra.mxu0 %v132
    %157 = vmatprep.subr.mxu0 0.0
    %158 = vmatpush1.msra.mxu0 %v133
    %159 = vmatprep.subr.mxu0 0.0
    %160 = vmatpush1.msra.mxu0 %v134
    %161 = vmatprep.subr.mxu0 0.0
    %162 = vmatpush1.msra.mxu0 %v135
    %163 = vmatprep.subr.mxu0 0.0
    %164 = vmatpush1.msra.mxu0 0.0
    %165 = vmatprep.subr.mxu0 0.0
    %166 = vmatpush1.msra.mxu0 0.0
    %167 = vmatprep.subr.mxu0 0.0
    %168 = vmatpush1.msra.mxu0 0.0
    %169 = vmatprep.subr.mxu0 0.0
    %170 = vmatpush1.msra.mxu0 0.0
    %171 = vmatprep.subr.mxu0 0.0
    %172 = vmatpush1.msra.mxu0 0.0
    %173 = vmatprep.subr.mxu0 0.0
    %174 = vmatpush1.msra.mxu0 0.0
    %175 = vmatprep.subr.mxu0 0.0
    %176 = vmatpush1.msra.mxu0 0.0
    %177 = vmatprep.subr.mxu0 0.0
    %178 = vmatpush1.msra.mxu0 0.0
    %179 = vmatprep.subr.mxu0 0.0
    %180 = vmatpush1.msra.mxu0 0.0
    %181 = vmatprep.subr.mxu0 0.0
    %182 = vmatpush1.msra.mxu0 0.0
    %183 = vmatprep.subr.mxu0 0.0
    %184 = vmatpush1.msra.mxu0 0.0
    %185 = vmatprep.subr.mxu0 0.0
    %186 = vmatpush1.msra.mxu0 0.0
    %187 = vmatprep.subr.mxu0 0.0
    %188 = vmatpush1.msra.mxu0 0.0
    %189 = vmatprep.subr.mxu0 0.0
    %190 = vmatpush1.msra.mxu0 0.0
    %191 = vmatprep.subr.mxu0 0.0
    %192 = vmatpush1.msra.mxu0 0.0
    %193 = vmatprep.subr.mxu0 0.0
    %194 = vmatpush1.msra.mxu0 0.0
    %195 = vmatprep.subr.mxu0 0.0
    %196 = vmatpush1.msra.mxu0 0.0
    %197 = vmatprep.subr.mxu0 0.0
    %198 = vmatpush1.msra.mxu0 0.0
    %199 = vmatprep.subr.mxu0 0.0
    %200 = vmatpush1.msra.mxu0 0.0
    %201 = vmatprep.subr.mxu0 0.0
    %202 = vmatpush1.msra.mxu0 0.0
    %203 = vmatprep.subr.mxu0 0.0
    %204 = vmatpush1.msra.mxu0 0.0
    %205 = vmatprep.subr.mxu0 0.0
    %206 = vmatpush1.msra.mxu0 0.0
    %207 = vmatprep.subr.mxu0 0.0
    %208 = vmatpush1.msra.mxu0 0.0
    %209 = vmatprep.subr.mxu0 0.0
    %210 = vmatpush1.msra.mxu0 0.0
    %211 = vmatprep.mubr.f32.mxu0 0.0
    %212 = vmatmul.mubr.f32.gmra.mrb[0].mxu0 %v145
    %v213 = vpop.f32.mrb[0].mxu0
    %v214 = vadd.f32 %v141, %v213
    %v215 = vpop.f32.mrb[0].mxu0
    %216 = vdwg.mxu0
    %v217 = vld [vmem:[%s5] sm:$0xff]
    %v218 = vld [vmem:[%s5 + $0x8] sm:$0xff]
    %v219 = vld [vmem:[%s5 + $0x10] sm:$0xff]
    %v220 = vld [vmem:[%s5 + $0x18] sm:$0xff]
    %v221 = vld [vmem:[%s6] sm:$0x1]
    %v223 = vlaneseq
    %v224 = vshrl.u32 %v223, 7
    %v225 = vsub.s32 0, %v224
    %v226 = vrot.slane %v221, %v225
    %vm228 = vcmask 261120
    %v230 = vsel %vm228, %v214, 0
    %232 = vmatprep.subr.mxu0 0.0
    %233 = vmatpush1.msra.mxu0 %v217
    %234 = vmatprep.subr.mxu0 0.0
    %235 = vmatpush1.msra.mxu0 %v218
    %236 = vmatprep.subr.mxu0 0.0
    %237 = vmatpush1.msra.mxu0 %v219
    %238 = vmatprep.subr.mxu0 0.0
    %239 = vmatpush1.msra.mxu0 %v220
    %240 = vmatprep.subr.mxu0 0.0
    %241 = vmatpush1.msra.mxu0 0.0
    %242 = vmatprep.subr.mxu0 0.0
    %243 = vmatpush1.msra.mxu0 0.0
    %244 = vmatprep.subr.mxu0 0.0
    %245 = vmatpush1.msra.mxu0 0.0
    %246 = vmatprep.subr.mxu0 0.0
    %247 = vmatpush1.msra.mxu0 0.0
    %248 = vmatprep.subr.mxu0 0.0
    %249 = vmatpush1.msra.mxu0 0.0
    %250 = vmatprep.subr.mxu0 0.0
    %251 = vmatpush1.msra.mxu0 0.0
    %252 = vmatprep.subr.mxu0 0.0
    %253 = vmatpush1.msra.mxu0 0.0
    %254 = vmatprep.subr.mxu0 0.0
    %255 = vmatpush1.msra.mxu0 0.0
    %256 = vmatprep.subr.mxu0 0.0
    %257 = vmatpush1.msra.mxu0 0.0
    %258 = vmatprep.subr.mxu0 0.0
    %259 = vmatpush1.msra.mxu0 0.0
    %260 = vmatprep.subr.mxu0 0.0
    %261 = vmatpush1.msra.mxu0 0.0
    %262 = vmatprep.subr.mxu0 0.0
    %263 = vmatpush1.msra.mxu0 0.0
    %264 = vmatprep.subr.mxu0 0.0
    %265 = vmatpush1.msra.mxu0 0.0
    %266 = vmatprep.subr.mxu0 0.0
    %267 = vmatpush1.msra.mxu0 0.0
    %268 = vmatprep.subr.mxu0 0.0
    %269 = vmatpush1.msra.mxu0 0.0
    %270 = vmatprep.subr.mxu0 0.0
    %271 = vmatpush1.msra.mxu0 0.0
    %272 = vmatprep.subr.mxu0 0.0
    %273 = vmatpush1.msra.mxu0 0.0
    %274 = vmatprep.subr.mxu0 0.0
    %275 = vmatpush1.msra.mxu0 0.0
    %276 = vmatprep.subr.mxu0 0.0
    %277 = vmatpush1.msra.mxu0 0.0
    %278 = vmatprep.subr.mxu0 0.0
    %279 = vmatpush1.msra.mxu0 0.0
    %280 = vmatprep.subr.mxu0 0.0
    %281 = vmatpush1.msra.mxu0 0.0
    %282 = vmatprep.subr.mxu0 0.0
    %283 = vmatpush1.msra.mxu0 0.0
    %284 = vmatprep.subr.mxu0 0.0
    %285 = vmatpush1.msra.mxu0 0.0
    %286 = vmatprep.subr.mxu0 0.0
    %287 = vmatpush1.msra.mxu0 0.0
    %288 = vmatprep.subr.mxu0 0.0
    %289 = vmatpush1.msra.mxu0 0.0
    %290 = vmatprep.subr.mxu0 0.0
    %291 = vmatpush1.msra.mxu0 0.0
    %292 = vmatprep.subr.mxu0 0.0
    %293 = vmatpush1.msra.mxu0 0.0
    %294 = vmatprep.subr.mxu0 0.0
    %295 = vmatpush1.msra.mxu0 0.0
    %296 = vmatprep.mubr.f32.mxu0 0.0
    %297 = vmatmul.mubr.f32.gmra.mrb[0].mxu0 %v230
    %v298 = vpop.f32.mrb[0].mxu0
    %v299 = vadd.f32 %v226, %v298
    %v300 = vpop.f32.mrb[0].mxu0
    %301 = vdwg.mxu0
    %v302 = vmax.f32 %v299, 0.0
    %v303 = vld [vmem:[%s7] sm:$0xff]
    %v304 = vld [vmem:[%s7 + $0x8] sm:$0xff]
    %v305 = vld [vmem:[%s7 + $0x10] sm:$0xff]
    %v306 = vld [vmem:[%s7 + $0x18] sm:$0xff]
    %v307 = vld [vmem:[%s7 + $0x20] sm:$0xff]
    %v308 = vld [vmem:[%s7 + $0x28] sm:$0xff]
    %v309 = vld [vmem:[%s7 + $0x30] sm:$0xff]
    %v310 = vld [vmem:[%s7 + $0x38] sm:$0xff]
    %v311 = vld [vmem:[%s8] sm:$0x1]
    %v313 = vlaneseq
    %v314 = vshrl.u32 %v313, 7
    %v315 = vsub.s32 0, %v314
    %v316 = vrot.slane %v311, %v315
    %v319 = vsel %vm143, %v302, 0
    %321 = vmatprep.subr.mxu0 0.0
    %322 = vmatpush1.msra.mxu0 %v303
    %323 = vmatprep.subr.mxu0 0.0
    %324 = vmatpush1.msra.mxu0 %v304
    %325 = vmatprep.subr.mxu0 0.0
    %326 = vmatpush1.msra.mxu0 %v305
    %327 = vmatprep.subr.mxu0 0.0
    %328 = vmatpush1.msra.mxu0 %v306
    %329 = vmatprep.subr.mxu0 0.0
    %330 = vmatpush1.msra.mxu0 %v307
    %331 = vmatprep.subr.mxu0 0.0
    %332 = vmatpush1.msra.mxu0 %v308
    %333 = vmatprep.subr.mxu0 0.0
    %334 = vmatpush1.msra.mxu0 %v309
    %335 = vmatprep.subr.mxu0 0.0
    %336 = vmatpush1.msra.mxu0 %v310
    %337 = vmatprep.subr.mxu0 0.0
    %338 = vmatpush1.msra.mxu0 0.0
    %339 = vmatprep.subr.mxu0 0.0
    %340 = vmatpush1.msra.mxu0 0.0
    %341 = vmatprep.subr.mxu0 0.0
    %342 = vmatpush1.msra.mxu0 0.0
    %343 = vmatprep.subr.mxu0 0.0
    %344 = vmatpush1.msra.mxu0 0.0
    %345 = vmatprep.subr.mxu0 0.0
    %346 = vmatpush1.msra.mxu0 0.0
    %347 = vmatprep.subr.mxu0 0.0
    %348 = vmatpush1.msra.mxu0 0.0
    %349 = vmatprep.subr.mxu0 0.0
    %350 = vmatpush1.msra.mxu0 0.0
    %351 = vmatprep.subr.mxu0 0.0
    %352 = vmatpush1.msra.mxu0 0.0
    %353 = vmatprep.subr.mxu0 0.0
    %354 = vmatpush1.msra.mxu0 0.0
    %355 = vmatprep.subr.mxu0 0.0
    %356 = vmatpush1.msra.mxu0 0.0
    %357 = vmatprep.subr.mxu0 0.0
    %358 = vmatpush1.msra.mxu0 0.0
    %359 = vmatprep.subr.mxu0 0.0
    %360 = vmatpush1.msra.mxu0 0.0
    %361 = vmatprep.subr.mxu0 0.0
    %362 = vmatpush1.msra.mxu0 0.0
    %363 = vmatprep.subr.mxu0 0.0
    %364 = vmatpush1.msra.mxu0 0.0
    %365 = vmatprep.subr.mxu0 0.0
    %366 = vmatpush1.msra.mxu0 0.0
    %367 = vmatprep.subr.mxu0 0.0
    %368 = vmatpush1.msra.mxu0 0.0
    %369 = vmatprep.subr.mxu0 0.0
    %370 = vmatpush1.msra.mxu0 0.0
    %371 = vmatprep.subr.mxu0 0.0
    %372 = vmatpush1.msra.mxu0 0.0
    %373 = vmatprep.subr.mxu0 0.0
    %374 = vmatpush1.msra.mxu0 0.0
    %375 = vmatprep.subr.mxu0 0.0
    %376 = vmatpush1.msra.mxu0 0.0
    %377 = vmatprep.subr.mxu0 0.0
    %378 = vmatpush1.msra.mxu0 0.0
    %379 = vmatprep.subr.mxu0 0.0
    %380 = vmatpush1.msra.mxu0 0.0
    %381 = vmatprep.subr.mxu0 0.0
    %382 = vmatpush1.msra.mxu0 0.0
    %383 = vmatprep.subr.mxu0 0.0
    %384 = vmatpush1.msra.mxu0 0.0
    %385 = vmatprep.mubr.f32.mxu0 0.0
    %386 = vmatmul.mubr.f32.gmra.mrb[0].mxu0 %v319
    %v387 = vpop.f32.mrb[0].mxu0
    %v388 = vadd.f32 %v316, %v387
    %v389 = vpop.f32.mrb[0].mxu0
    %390 = vdwg.mxu0
    %391 = vst [vmem:[#allocation2] sm:$0x3] %v388
    // Predicated region
    $region38: #{tpu_custom_call.1} parent=1 // pred_check
      _
    $region39: #{tpu_custom_call.1} parent=1 // pred_check_branch
      %393 = sbr.rel (0) target = $region41
    $region40: #{tpu_custom_call.1} parent=1 // pred_region
      %s395 = ssub.s32 32, 32
      %396 = vsyncadd [#allocation3], %s395
      %s398 = sshll.u32 [#allocation2], 4
      %s399 = int_to_ptr.vmem [resolvable:$true] %s398
      %401 = dma.vmem_to_hbm [thread:$0]  %s399, 32, %s9, [#allocation3]
    $region41: #{tpu_custom_call.1} parent=1 // pred_fallthru
      _
    // Predicated region
    $region42: #{tpu_custom_call.1} parent=1 // pred_check
      _
    $region43: #{tpu_custom_call.1} parent=1 // pred_check_branch
      %403 = sbr.rel (0) target = $region45
    $region44: #{tpu_custom_call.1} parent=1 // pred_region
      %404 = dma.done [#allocation3], 32
    $region45: #{tpu_custom_call.1} parent=1 // pred_fallthru
      _
    %405 = vsyncpa [#allocation3], 1

</llo_original>
